<compile_context>
chip_gen: v6e
topology: v6e:2x2x1
jax: 0.10.0
libtpu: 0.0.40
codegen_flags: <defaults>
</compile_context>

<pallas_src>
import jax
import jax.numpy as jnp
from jax.experimental import pallas as pl
from jax.experimental.pallas import tpu as pltpu


def _round_up(x, m):
    return ((x + m - 1) // m) * m


def _beta_embedding_kernel(beta_ref, table_ref, o_ref):
    # beta_ref : (TB, 1)  int32 indices          (VMEM)
    # table_ref: (V, Dp)  f32 embedding weight   (VMEM, resident across grid steps)
    # o_ref    : (TB, Dp) f32 gathered rows      (VMEM, lane-dense)
    beta = beta_ref[...]                                   # (TB, 1)
    acc = jnp.zeros(o_ref.shape, jnp.float32)              # (TB, Dp)
    # Unrolled one-hot select-accumulate over the small vocabulary: exactly one
    # vocabulary row matches each batch index, all other terms add 0.0 -> exact.
    for v in range(table_ref.shape[0]):
        row = table_ref[pl.ds(v, 1), :]                    # (1, Dp) static row view
        acc = acc + jnp.where(beta == v, row, 0.0)         # broadcast to (TB, Dp)
    o_ref[...] = acc


def beta_embedding_forward(table, beta, *, batch_tile=8):
    """Pallas equivalent of  torch.squeeze(nn.Embedding(beta_dim, d_model)(beta)).

    table: (beta_dim, d_model) float32 embedding weight.
    beta : (B,) or (B, 1) integer indices.
    Returns the squeezed embedding (normally (B, d_model))."""
    beta = jnp.asarray(beta)
    beta2 = beta.reshape(-1, 1).astype(jnp.int32)          # (B, 1), like beta.view(-1, 1)
    B = beta2.shape[0]
    V, D = table.shape

    TB = batch_tile
    Bp = _round_up(max(B, 1), TB)
    Dp = _round_up(D, 128)

    # Tiny index pad (at most TB-1 extra int32 rows); lane-pad the weight only if needed.
    beta_p = jnp.zeros((Bp, 1), jnp.int32).at[:B, :].set(beta2)
    table_p = table.astype(jnp.float32)
    if Dp != D:
        table_p = jnp.zeros((V, Dp), jnp.float32).at[:, :D].set(table_p)

    out = pl.pallas_call(
        _beta_embedding_kernel,
        out_shape=jax.ShapeDtypeStruct((Bp, Dp), jnp.float32),
        grid=(Bp // TB,),
        in_specs=[
            pl.BlockSpec((TB, 1), lambda i: (i, 0)),       # batch tile of indices
            pl.BlockSpec((V, Dp), lambda i: (0, 0)),       # full table, stays resident
        ],
        out_specs=pl.BlockSpec((TB, Dp), lambda i: (i, 0)),
        compiler_params=pltpu.CompilerParams(
            dimension_semantics=("parallel",)),
    )(beta_p, table_p)

    out = out[:B, :D]
    # torch.squeeze on the (B, 1, d_model) embedding output -> drop remaining 1-dims.
    return jnp.squeeze(out)


if __name__ == "__main__":
    key = jax.random.PRNGKey(0)
    k_tbl, k_idx = jax.random.split(key)

    beta_dim, d_model, batch = 5, 128, 2

    # nn.Embedding(beta_dim, d_model) weight and a (B, 1) index column, as used by the
    # surrounding model (beta[:, i].view(-1, 1)).
    table = 0.1 * jax.random.normal(k_tbl, (beta_dim, d_model), jnp.float32)
    beta = jax.random.randint(k_idx, (batch, 1), 0, beta_dim, jnp.int32)

    out = beta_embedding_forward(table, beta)
    jax.block_until_ready(out)

    ref = jnp.squeeze(table[beta[:, 0]])                   # plain-JAX reference gather
    assert out.shape == (batch, d_model) and out.dtype == jnp.float32
    assert jnp.allclose(out, ref, atol=1e-6, rtol=0.0)

    print("KERNEL_OK")
</pallas_src>

<mosaic_0001>
module attributes {stable_mosaic.version = 11 : i64} {
  func.func @_beta_embedding_kernel(%arg0: i32, %arg1: memref<8x1xi32, #tpu.memory_space<vmem>>, %arg2: memref<5x128xf32, #tpu.memory_space<vmem>>, %arg3: memref<8x128xf32, #tpu.memory_space<vmem>>) attributes {dimension_semantics = [#tpu.dimension_semantics<parallel>], iteration_bounds = array<i64: 1>, scalar_prefetch = 0 : i64, scratch_operands = 0 : i64, tpu.core_type = #tpu.core_type<tc>, window_params = [{transform_indices = @transform_0, window_bounds = array<i64: 8, 1>}, {pipeline_mode = #tpu.pipeline_mode<synchronous>, transform_indices = @transform_1, window_bounds = array<i64: 5, 128>}, {transform_indices = @transform_2, window_bounds = array<i64: 8, 128>}]} {
    %c0 = arith.constant 0 : index
    %c0_0 = arith.constant 0 : index
    %0 = vector.load %arg1[%c0, %c0_0] : memref<8x1xi32, #tpu.memory_space<vmem>>, vector<8x1xi32>
    %cst = arith.constant 0.000000e+00 : f32
    %1 = vector.broadcast %cst : f32 to vector<8x128xf32>
    %c0_1 = arith.constant 0 : index
    %c0_2 = arith.constant 0 : index
    %2 = vector.load %arg2[%c0_1, %c0_2] : memref<5x128xf32, #tpu.memory_space<vmem>>, vector<1x128xf32>
    %c0_i32 = arith.constant 0 : i32
    %3 = vector.broadcast %c0_i32 : i32 to vector<8x1xi32>
    %4 = arith.cmpi eq, %0, %3 : vector<8x1xi32>
    %cst_3 = arith.constant 0.000000e+00 : f32
    %5 = vector.shape_cast %4 : vector<8x1xi1> to vector<8x1xi1>
    %6 = vector.broadcast %5 : vector<8x1xi1> to vector<8x128xi1>
    %7 = vector.shape_cast %2 : vector<1x128xf32> to vector<1x128xf32>
    %8 = vector.broadcast %7 : vector<1x128xf32> to vector<8x128xf32>
    %9 = vector.broadcast %cst_3 : f32 to vector<8x128xf32>
    %10 = arith.select %6, %8, %9 : vector<8x128xi1>, vector<8x128xf32>
    %11 = arith.addf %1, %10 : vector<8x128xf32>
    %c1 = arith.constant 1 : index
    %c0_4 = arith.constant 0 : index
    %12 = vector.load %arg2[%c1, %c0_4] : memref<5x128xf32, #tpu.memory_space<vmem>>, vector<1x128xf32>
    %c1_i32 = arith.constant 1 : i32
    %13 = vector.broadcast %c1_i32 : i32 to vector<8x1xi32>
    %14 = arith.cmpi eq, %0, %13 : vector<8x1xi32>
    %cst_5 = arith.constant 0.000000e+00 : f32
    %15 = vector.shape_cast %14 : vector<8x1xi1> to vector<8x1xi1>
    %16 = vector.broadcast %15 : vector<8x1xi1> to vector<8x128xi1>
    %17 = vector.shape_cast %12 : vector<1x128xf32> to vector<1x128xf32>
    %18 = vector.broadcast %17 : vector<1x128xf32> to vector<8x128xf32>
    %19 = vector.broadcast %cst_5 : f32 to vector<8x128xf32>
    %20 = arith.select %16, %18, %19 : vector<8x128xi1>, vector<8x128xf32>
    %21 = arith.addf %11, %20 : vector<8x128xf32>
    %c2 = arith.constant 2 : index
    %c0_6 = arith.constant 0 : index
    %22 = vector.load %arg2[%c2, %c0_6] : memref<5x128xf32, #tpu.memory_space<vmem>>, vector<1x128xf32>
    %c2_i32 = arith.constant 2 : i32
    %23 = vector.broadcast %c2_i32 : i32 to vector<8x1xi32>
    %24 = arith.cmpi eq, %0, %23 : vector<8x1xi32>
    %cst_7 = arith.constant 0.000000e+00 : f32
    %25 = vector.shape_cast %24 : vector<8x1xi1> to vector<8x1xi1>
    %26 = vector.broadcast %25 : vector<8x1xi1> to vector<8x128xi1>
    %27 = vector.shape_cast %22 : vector<1x128xf32> to vector<1x128xf32>
    %28 = vector.broadcast %27 : vector<1x128xf32> to vector<8x128xf32>
    %29 = vector.broadcast %cst_7 : f32 to vector<8x128xf32>
    %30 = arith.select %26, %28, %29 : vector<8x128xi1>, vector<8x128xf32>
    %31 = arith.addf %21, %30 : vector<8x128xf32>
    %c3 = arith.constant 3 : index
    %c0_8 = arith.constant 0 : index
    %32 = vector.load %arg2[%c3, %c0_8] : memref<5x128xf32, #tpu.memory_space<vmem>>, vector<1x128xf32>
    %c3_i32 = arith.constant 3 : i32
    %33 = vector.broadcast %c3_i32 : i32 to vector<8x1xi32>
    %34 = arith.cmpi eq, %0, %33 : vector<8x1xi32>
    %cst_9 = arith.constant 0.000000e+00 : f32
    %35 = vector.shape_cast %34 : vector<8x1xi1> to vector<8x1xi1>
    %36 = vector.broadcast %35 : vector<8x1xi1> to vector<8x128xi1>
    %37 = vector.shape_cast %32 : vector<1x128xf32> to vector<1x128xf32>
    %38 = vector.broadcast %37 : vector<1x128xf32> to vector<8x128xf32>
    %39 = vector.broadcast %cst_9 : f32 to vector<8x128xf32>
    %40 = arith.select %36, %38, %39 : vector<8x128xi1>, vector<8x128xf32>
    %41 = arith.addf %31, %40 : vector<8x128xf32>
    %c4 = arith.constant 4 : index
    %c0_10 = arith.constant 0 : index
    %42 = vector.load %arg2[%c4, %c0_10] : memref<5x128xf32, #tpu.memory_space<vmem>>, vector<1x128xf32>
    %c4_i32 = arith.constant 4 : i32
    %43 = vector.broadcast %c4_i32 : i32 to vector<8x1xi32>
    %44 = arith.cmpi eq, %0, %43 : vector<8x1xi32>
    %cst_11 = arith.constant 0.000000e+00 : f32
    %45 = vector.shape_cast %44 : vector<8x1xi1> to vector<8x1xi1>
    %46 = vector.broadcast %45 : vector<8x1xi1> to vector<8x128xi1>
    %47 = vector.shape_cast %42 : vector<1x128xf32> to vector<1x128xf32>
    %48 = vector.broadcast %47 : vector<1x128xf32> to vector<8x128xf32>
    %49 = vector.broadcast %cst_11 : f32 to vector<8x128xf32>
    %50 = arith.select %46, %48, %49 : vector<8x128xi1>, vector<8x128xf32>
    %51 = arith.addf %41, %50 : vector<8x128xf32>
    %c0_12 = arith.constant 0 : index
    %c0_13 = arith.constant 0 : index
    %52 = vector.load %arg3[%c0_12, %c0_13] : memref<8x128xf32, #tpu.memory_space<vmem>>, vector<8x128xf32>
    tpu.vector_store %arg3[%c0_12, %c0_13], %51 {strides = array<i32>} : memref<8x128xf32, #tpu.memory_space<vmem>>, vector<8x128xf32>,
    return
  }
  func.func @transform_0(%arg0: i32) -> (i32, i32) {
    %c0_i32 = arith.constant 0 : i32
    %c0_i32_0 = arith.constant 0 : i32
    return %arg0, %c0_i32 : i32, i32
  }
  func.func @transform_1(%arg0: i32) -> (i32, i32) {
    %c0_i32 = arith.constant 0 : i32
    %c0_i32_0 = arith.constant 0 : i32
    %c0_i32_1 = arith.constant 0 : i32
    return %c0_i32, %c0_i32_0 : i32, i32
  }
  func.func @transform_2(%arg0: i32) -> (i32, i32) {
    %c0_i32 = arith.constant 0 : i32
    %c0_i32_0 = arith.constant 0 : i32
    return %arg0, %c0_i32 : i32, i32
  }
}

</mosaic_0001>

<llo_original>
// kernel: tpu_custom_call.1
$region0: #{tpu_custom_call.1}
  #allocation0 [shape = 'u32[]', space=smem, size = 0x4, offset = 0x4, fixed_abs, tag = 'smem constant byte address 0x4 - core index']
  #allocation1 [shape = 'u32[144,128]{1,0:T(1,128)}', space=vmem, size = 0x12000, scoped, tag = 'internal scratch']
  %s0 = inlined_call_operand.vmem [shape: s32[8,1], index: 0, kind: input, shape index: {}]
  %s1 = inlined_call_operand.vmem [shape: f32[5,128], index: 1, kind: input, shape index: {}]
  %s2 = inlined_call_operand.hbm [shape: f32[8,128], index: 2, kind: output, shape index: {}]
  %s3 = sld [smem:[#allocation0]]
  $region18: #{tpu_custom_call.1} parent=0
    _
  %s5 = ssub.s32 1, %s3
  %s6 = scalar_select 0, %s5, %s3
  $region1: #{tpu_custom_call.1} parent=0
    #allocation2 [shape = 'u8[4096]{0}', space=vmem, size = 0x1000, scoped, tag = 'output window, operand 0, single buffered']
    #allocation3 [shape = 's32[1]{0}', space=sflag, size = 0x4, scoped, tag = 'scoped memory for tpu_custom_call.1']
    %7 = vsyncpa [#allocation3], 0
    // Predicated region
    $region2: #{tpu_custom_call.1} parent=1 // pred_check
      _
    $region3: #{tpu_custom_call.1} parent=1 // pred_check_branch
      %9 = sbr.rel (0) target = $region5
    $region4: #{tpu_custom_call.1} parent=1 // pred_region
      _
    $region5: #{tpu_custom_call.1} parent=1 // pred_fallthru
      _
    // Predicated region
    $region6: #{tpu_custom_call.1} parent=1 // pred_check
      _
    $region7: #{tpu_custom_call.1} parent=1 // pred_check_branch
      %11 = sbr.rel (0) target = $region9
    $region8: #{tpu_custom_call.1} parent=1 // pred_region
      _
    $region9: #{tpu_custom_call.1} parent=1 // pred_fallthru
      _
    %v12 = vld [vmem:[%s0] sm:$0xff]
    %v13 = vld [vmem:[%s1] sm:$0x1]
    %vm14 = vcmp.eq.s32.totalorder %v12, 0
    %v15 = vsel %vm14, 1, 0
    %16 = vset.pattern.permute.xlu0 0
    %17 = vperm.xlu0 %16, %v15
    %v18 = vpop.permute.xlu0 %17
    %vm19 = vcmp.eq.s32.totalorder %v18, 1
    %v20 = vlaneseq
    %v21 = vshrl.u32 %v20, 7
    %v22 = vsub.s32 0, %v21
    %v23 = vrot.slane %v13, %v22
    %v24 = vsel %vm19, %v23, 0.0
    %v25 = vadd.f32 %v24, 0.0
    %v26 = vld [vmem:[%s1 + $0x1] sm:$0x1]
    %vm27 = vcmp.eq.s32.totalorder %v12, 1
    %v28 = vsel %vm27, 1, 0
    %29 = vset.pattern.permute.xlu0 0
    %30 = vperm.xlu0 %29, %v28
    %v31 = vpop.permute.xlu0 %30
    %vm32 = vcmp.eq.s32.totalorder %v31, 1
    %v33 = vlaneseq
    %v34 = vshrl.u32 %v33, 7
    %v35 = vsub.s32 0, %v34
    %v36 = vrot.slane %v26, %v35
    %v37 = vsel %vm32, %v36, 0.0
    %v38 = vadd.f32 %v25, %v37
    %v39 = vld [vmem:[%s1 + $0x2] sm:$0x1]
    %vm40 = vcmp.eq.s32.totalorder %v12, 2
    %v41 = vsel %vm40, 1, 0
    %42 = vset.pattern.permute.xlu0 0
    %43 = vperm.xlu0 %42, %v41
    %v44 = vpop.permute.xlu0 %43
    %vm45 = vcmp.eq.s32.totalorder %v44, 1
    %v46 = vlaneseq
    %v47 = vshrl.u32 %v46, 7
    %v48 = vsub.s32 0, %v47
    %v49 = vrot.slane %v39, %v48
    %v50 = vsel %vm45, %v49, 0.0
    %v51 = vadd.f32 %v38, %v50
    %v52 = vld [vmem:[%s1 + $0x3] sm:$0x1]
    %vm53 = vcmp.eq.s32.totalorder %v12, 3
    %v54 = vsel %vm53, 1, 0
    %55 = vset.pattern.permute.xlu0 0
    %56 = vperm.xlu0 %55, %v54
    %v57 = vpop.permute.xlu0 %56
    %vm58 = vcmp.eq.s32.totalorder %v57, 1
    %v59 = vlaneseq
    %v60 = vshrl.u32 %v59, 7
    %v61 = vsub.s32 0, %v60
    %v62 = vrot.slane %v52, %v61
    %v63 = vsel %vm58, %v62, 0.0
    %v64 = vadd.f32 %v51, %v63
    %v65 = vld [vmem:[%s1 + $0x4] sm:$0x1]
    %vm66 = vcmp.eq.s32.totalorder %v12, 4
    %v67 = vsel %vm66, 1, 0
    %68 = vset.pattern.permute.xlu0 0
    %69 = vperm.xlu0 %68, %v67
    %v70 = vpop.permute.xlu0 %69
    %vm71 = vcmp.eq.s32.totalorder %v70, 1
    %v72 = vlaneseq
    %v73 = vshrl.u32 %v72, 7
    %v74 = vsub.s32 0, %v73
    %v75 = vrot.slane %v65, %v74
    %v76 = vsel %vm71, %v75, 0.0
    %v77 = vadd.f32 %v64, %v76
    %78 = vst [vmem:[#allocation2] sm:$0xff] %v77
    // Predicated region
    $region10: #{tpu_custom_call.1} parent=1 // pred_check
      _
    $region11: #{tpu_custom_call.1} parent=1 // pred_check_branch
      %80 = sbr.rel (0) target = $region13
    $region12: #{tpu_custom_call.1} parent=1 // pred_region
      %s82 = ssub.s32 128, 128
      %83 = vsyncadd [#allocation3], %s82
      %s85 = sshll.u32 [#allocation2], 4
      %s86 = int_to_ptr.vmem [resolvable:$true] %s85
      %88 = dma.vmem_to_hbm [thread:$0]  %s86, 128, %s2, [#allocation3]
    $region13: #{tpu_custom_call.1} parent=1 // pred_fallthru
      _
    // Predicated region
    $region14: #{tpu_custom_call.1} parent=1 // pred_check
      _
    $region15: #{tpu_custom_call.1} parent=1 // pred_check_branch
      %90 = sbr.rel (0) target = $region17
    $region16: #{tpu_custom_call.1} parent=1 // pred_region
      %91 = dma.done [#allocation3], 128
    $region17: #{tpu_custom_call.1} parent=1 // pred_fallthru
      _
    %92 = vsyncpa [#allocation3], 1

</llo_original>
